<compile_context>
chip_gen: v7x
topology: tpu7x:2x2x1
jax: 0.10.0
libtpu: 0.0.40
codegen_flags: <defaults>
</compile_context>

<pallas_src>
import jax
import jax.numpy as jnp
from jax.experimental import pallas as pl
from jax.experimental.pallas import tpu as pltpu

_LANE = 128
_SUBLANE = 8


def _round_up(x, m):
    return ((x + m - 1) // m) * m


def _round_down(x, m):
    return (x // m) * m


def _inv1x1_kernel(w_ref, z_ref, o_ref):
    # w_ref: (Cw, Cw) block-diagonal weight (constant index map -> resident)
    # z_ref: (Cw, TK) one lane-dense K tile of one (folded) batch element
    # o_ref: (Cw, TK)
    o_ref[...] = jnp.dot(
        w_ref[...], z_ref[...], preferred_element_type=jnp.float32
    ).astype(o_ref.dtype)


def _plan(B, C, K, itemsize, vmem_plan_bytes, max_tk):
    """Choose (fold, Bw, Cw, tk): fold batch elems folded into channels, K tile."""
    # sublanes per vreg for this dtype (f32: 8, bf16/f16: 16, int8/fp8: 32)
    sub = _SUBLANE * max(1, 4 // itemsize)

    # --- fold: target Cw ~= 128 (sublane-full rows, MXU-native contraction)
    fold = 1
    if C < _LANE and B > 1:
        cand = max(1, _LANE // C)
        for g in range(min(cand, B), 0, -1):
            if B % g == 0:
                fold = g
                break
    Cw = fold * C
    Bw = B // fold
    Cw_sub = _round_up(Cw, sub)

    # --- K tile from the VMEM plan: double-buffered input + output tiles plus
    #     the (conservatively double-counted) resident weight buffer.
    w_bytes = 2 * _round_up(Cw, sub) * _round_up(Cw, _LANE) * itemsize
    usable = max(vmem_plan_bytes - w_bytes - (2 << 20),
                 4 * Cw_sub * itemsize * _LANE)
    tk_budget = usable // (4 * Cw_sub * itemsize)

    if K <= _LANE:
        tk = K                          # block == full K dim (allowed)
    else:
        tk = max(_LANE, _round_down(min(tk_budget, K, max_tk), _LANE))
        if Bw == 1 and K > 2 * _LANE:
            # keep >= 2 K tiles so the only non-trivial grid axis can still be
            # split across v7x's two TensorCores (no effect on v5e/v6e: 1 TC).
            tk = min(tk, max(_LANE, _round_down((K + 1) // 2, _LANE)))
    return fold, Bw, Cw, tk


def invertible_1x1_conv(z, W, *, vmem_plan_bytes=40 << 20,
                        vmem_limit_bytes=48 << 20, max_tk=None):
    """Forward pass: returns (W @ z per position, B*K*logdet(W))."""
    B, C, K = z.shape
    dtype = z.dtype
    itemsize = jnp.dtype(dtype).itemsize
    max_tk = max_tk if max_tk is not None else (1 << 30)

    fold, Bw, Cw, tk = _plan(B, C, K, itemsize, vmem_plan_bytes, max_tk)

    if fold > 1:
        z_work = z.reshape(Bw, Cw, K)
        W_work = jnp.kron(jnp.eye(fold, dtype=W.dtype), W)  # block-diag(W,...,W)
    else:
        z_work = z
        W_work = W
    # Keep bf16/f16 activations on the fast MXU path (f32 accumulate comes from
    # preferred_element_type in the kernel); removes per-step VPU upcast filler.
    W_work = W_work.astype(dtype)

    n_k = pl.cdiv(K, tk)
    grid = (n_k, Bw)  # K-tile axis first: the axis with many steps leads

    # Roofline hint: traffic ~= read z + write out (+ tiny resident weight).
    bytes_accessed = 2 * Bw * Cw * K * itemsize + Cw * Cw * itemsize
    flops = 2 * Bw * Cw * Cw * K

    out = pl.pallas_call(
        _inv1x1_kernel,
        out_shape=jax.ShapeDtypeStruct((Bw, Cw, K), dtype),
        grid_spec=pltpu.PrefetchScalarGridSpec(
            num_scalar_prefetch=0,
            grid=grid,
            in_specs=[
                # weight: same block every step -> DMA'd once, stays resident
                pl.BlockSpec((Cw, Cw), lambda k, b: (0, 0)),
                # one lane-dense (Cw, tk) tile per step; ragged last K tile is
                # masked by Pallas, so no wrapper pad/slice HBM passes.
                # (If profiling shows exposed input DMA, sweep
                #  pipeline_mode=pl.Buffered(3) here.)
                pl.BlockSpec((pl.Squeezed(), Cw, tk), lambda k, b: (b, 0, k)),
            ],
            out_specs=pl.BlockSpec((pl.Squeezed(), Cw, tk), lambda k, b: (b, 0, k)),
        ),
        compiler_params=pltpu.CompilerParams(
            # both axes independent -> shardable across v7x's two TensorCores
            dimension_semantics=("parallel", "parallel"),
            # planned tile footprint (<= ~40 MiB) + headroom; safe on v7x's
            # 64 MiB physical VMEM, well above v5e's 16 MiB scoped default.
            vmem_limit_bytes=vmem_limit_bytes,
        ),
        cost_estimate=pl.CostEstimate(
            flops=flops, transcendentals=0, bytes_accessed=bytes_accessed
        ),
    )(W_work, z_work)

    if fold > 1:
        out = out.reshape(B, C, K)

    # TODO(synk): logdet (LU/QR factorization) has no clean Pallas primitive;
    # computed as plain-JAX glue on the tiny (C, C) weight.
    # torch.logdet semantics: det<0 -> NaN, det==0 -> -inf (slogdet already
    # gives logabsdet=-inf when sign==0).
    sign, logabsdet = jnp.linalg.slogdet(W.astype(jnp.float32))
    log_det_W = (B * K) * jnp.where(sign < 0, jnp.nan, logabsdet)
    return out, log_det_W


def make_weight(key, c):
    """Deterministic orthogonal weight, matching the module's __init__."""
    A = jax.random.normal(key, (c, c), dtype=jnp.float32)
    Wq, _ = jnp.linalg.qr(A)
    d = jnp.linalg.det(Wq)
    Wq = Wq.at[:, 0].set(jnp.where(d < 0, -Wq[:, 0], Wq[:, 0]))
    return Wq


if __name__ == "__main__":
    key = jax.random.PRNGKey(0)
    k_w, k_z, k_w2, k_z2 = jax.random.split(key, 4)

    # Shapes implied by the module's Conv1d forward: z is (B, C, K).
    B, C, K = 2, 4, 16
    W = make_weight(k_w, C)                                   # (C, C)
    z = jax.random.normal(k_z, (B, C, K), dtype=jnp.float32)  # (B, C, K)

    out, log_det_W = invertible_1x1_conv(z, W)
    jax.block_until_ready(out)
    jax.block_until_ready(log_det_W)

    ref = jnp.einsum("ij,bjk->bik", W, z)
    assert out.shape == (B, C, K)
    assert jnp.allclose(out, ref, atol=1e-5, rtol=1e-5)
    ref_logdet = (B * K) * jnp.linalg.slogdet(W.astype(jnp.float32))[1]
    assert jnp.allclose(log_det_W, ref_logdet, atol=1e-5, rtol=1e-5)

    # Second small check: odd batch (fold=3) + ragged K tiles (K not a
    # multiple of 128) exercises the masked-tail path with no wrapper padding.
    B2, C2, K2 = 3, 4, 300
    W2 = make_weight(k_w2, C2)
    z2 = jax.random.normal(k_z2, (B2, C2, K2), dtype=jnp.float32)
    out2, log_det_W2 = invertible_1x1_conv(z2, W2)
    jax.block_until_ready(out2)
    jax.block_until_ready(log_det_W2)
    ref2 = jnp.einsum("ij,bjk->bik", W2, z2)
    assert out2.shape == (B2, C2, K2)
    assert jnp.allclose(out2, ref2, atol=1e-5, rtol=1e-5)

    print("KERNEL_OK")
</pallas_src>

<mosaic_0001>
module attributes {stable_mosaic.version = 11 : i64} {
  func.func @_inv1x1_kernel(%arg0: i32, %arg1: i32, %arg2: memref<8x8xf32, #tpu.memory_space<vmem>>, %arg3: memref<1x8x16xf32, #tpu.memory_space<vmem>>, %arg4: memref<1x8x16xf32, #tpu.memory_space<vmem>>) attributes {dimension_semantics = [#tpu.dimension_semantics<parallel>, #tpu.dimension_semantics<parallel>], iteration_bounds = array<i64: 1, 1>, scalar_prefetch = 0 : i64, scratch_operands = 0 : i64, tpu.core_type = #tpu.core_type<tc>, window_params = [{pipeline_mode = #tpu.pipeline_mode<synchronous>, transform_indices = @transform_0, window_bounds = array<i64: 8, 8>}, {transform_indices = @transform_1, window_bounds = array<i64: 1, 8, 16>}, {transform_indices = @transform_2, window_bounds = array<i64: 1, 8, 16>}]} {
    %c0 = arith.constant 0 : index
    %c0_0 = arith.constant 0 : index
    %0 = vector.load %arg2[%c0, %c0_0] : memref<8x8xf32, #tpu.memory_space<vmem>>, vector<8x8xf32>
    %c0_1 = arith.constant 0 : index
    %c0_2 = arith.constant 0 : index
    %c0_3 = arith.constant 0 : index
    %1 = vector.load %arg3[%c0_1, %c0_2, %c0_3] : memref<1x8x16xf32, #tpu.memory_space<vmem>>, vector<1x8x16xf32>
    %2 = vector.shape_cast %1 : vector<1x8x16xf32> to vector<8x16xf32>
    %cst = arith.constant dense<0.000000e+00> : vector<8x16xf32>
    %3 = tpu.matmul %0, %2, %cst {dimension_numbers = #tpu.dot_dimension_numbers<[1], [0], [0], [1], [0, 0, 1, 1], [], []>} : vector<8x8xf32>, vector<8x16xf32>, vector<8x16xf32> -> vector<8x16xf32>
    %c0_4 = arith.constant 0 : index
    %c0_5 = arith.constant 0 : index
    %c0_6 = arith.constant 0 : index
    %4 = vector.load %arg4[%c0_4, %c0_5, %c0_6] : memref<1x8x16xf32, #tpu.memory_space<vmem>>, vector<1x8x16xf32>
    %5 = vector.shape_cast %4 : vector<1x8x16xf32> to vector<8x16xf32>
    %6 = vector.shape_cast %3 : vector<8x16xf32> to vector<1x8x16xf32>
    tpu.vector_store %arg4[%c0_4, %c0_5, %c0_6], %6 {strides = array<i32>} : memref<1x8x16xf32, #tpu.memory_space<vmem>>, vector<1x8x16xf32>,
    return
  }
  func.func @transform_0(%arg0: i32, %arg1: i32) -> (i32, i32) {
    %c0_i32 = arith.constant 0 : i32
    %c0_i32_0 = arith.constant 0 : i32
    %c0_i32_1 = arith.constant 0 : i32
    return %c0_i32, %c0_i32_0 : i32, i32
  }
  func.func @transform_1(%arg0: i32, %arg1: i32) -> (i32, i32, i32) {
    %c0_i32 = arith.constant 0 : i32
    %c0_i32_0 = arith.constant 0 : i32
    return %arg1, %c0_i32, %arg0 : i32, i32, i32
  }
  func.func @transform_2(%arg0: i32, %arg1: i32) -> (i32, i32, i32) {
    %c0_i32 = arith.constant 0 : i32
    %c0_i32_0 = arith.constant 0 : i32
    return %arg1, %c0_i32, %arg0 : i32, i32, i32
  }
}

</mosaic_0001>

<llo_original>
// kernel: tpu_custom_call.1
$region0: #{tpu_custom_call.1}
  #allocation0 [shape = 'u32[]', space=smem, size = 0x4, offset = 0x4, fixed_abs, tag = 'smem constant byte address 0x4 - core index']
  #allocation1 [shape = 'u32[144,128]{1,0:T(1,128)}', space=vmem, size = 0x12000, scoped, tag = 'internal scratch']
  %s0 = inlined_call_operand.hbm [shape: f32[8,8], index: 0, kind: input, shape index: {}]
  %s1 = inlined_call_operand.hbm [shape: f32[1,8,16], index: 1, kind: input, shape index: {}]
  %s2 = inlined_call_operand.hbm [shape: f32[1,8,16], index: 2, kind: output, shape index: {}]
  %s3 = sld [smem:[#allocation0]]
  $region26: #{tpu_custom_call.1} parent=0
    _
  %s5 = ssub.s32 1, %s3
  %s6 = scalar_select 0, %s5, %s3
  $region1: #{tpu_custom_call.1} parent=0
    #allocation2 [shape = 'u8[4096]{0}', space=vmem, size = 0x1000, scoped, tag = 'input window, operand 0, single buffered']
    #allocation3 [shape = 's32[1]{0}', space=sflag, size = 0x4, scoped, tag = 'scoped memory for tpu_custom_call.1']
    #allocation4 [shape = 's32[1]{0}', space=sflag, size = 0x4, scoped, tag = 'scoped memory for tpu_custom_call.1']
    #allocation5 [shape = 'u8[4096]{0}', space=vmem, size = 0x1000, scoped, tag = 'input window, operand 1, single buffered']
    #allocation6 [shape = 's32[1]{0}', space=sflag, size = 0x4, scoped, tag = 'scoped memory for tpu_custom_call.1']
    #allocation7 [shape = 'u8[4096]{0}', space=vmem, size = 0x1000, scoped, tag = 'output window, operand 0, single buffered']
    %7 = vsyncpa [#allocation3], 0
    %8 = vsyncpa [#allocation6], 0
    %9 = vsyncpa [#allocation4], 0
    // Predicated region
    $region2: #{tpu_custom_call.1} parent=1 // pred_check
      _
    $region3: #{tpu_custom_call.1} parent=1 // pred_check_branch
      %11 = sbr.rel (0) target = $region5
    $region4: #{tpu_custom_call.1} parent=1 // pred_region
      %s13 = ssub.s32 128, 128
      %14 = vsyncadd [#allocation3], %s13
      %s16 = sshll.u32 [#allocation2], 4
      %s17 = int_to_ptr.vmem [resolvable:$true] %s16
      %19 = dma.hbm_to_vmem [thread:$0]  %s0, 128, %s17, [#allocation3]
    $region5: #{tpu_custom_call.1} parent=1 // pred_fallthru
      _
    // Predicated region
    $region6: #{tpu_custom_call.1} parent=1 // pred_check
      _
    $region7: #{tpu_custom_call.1} parent=1 // pred_check_branch
      %21 = sbr.rel (0) target = $region9
    $region8: #{tpu_custom_call.1} parent=1 // pred_region
      %s23 = ssub.s32 128, 128
      %24 = vsyncadd [#allocation6], %s23
      %s26 = sshll.u32 [#allocation5], 4
      %s27 = int_to_ptr.vmem [resolvable:$true] %s26
      %29 = dma.hbm_to_vmem [thread:$0]  %s1, 128, %s27, [#allocation6]
    $region9: #{tpu_custom_call.1} parent=1 // pred_fallthru
      _
    // Predicated region
    $region10: #{tpu_custom_call.1} parent=1 // pred_check
      _
    $region11: #{tpu_custom_call.1} parent=1 // pred_check_branch
      %31 = sbr.rel (0) target = $region13
    $region12: #{tpu_custom_call.1} parent=1 // pred_region
      %32 = dma.done [#allocation3], 128
    $region13: #{tpu_custom_call.1} parent=1 // pred_fallthru
      _
    // Predicated region
    $region14: #{tpu_custom_call.1} parent=1 // pred_check
      _
    $region15: #{tpu_custom_call.1} parent=1 // pred_check_branch
      %34 = sbr.rel (0) target = $region17
    $region16: #{tpu_custom_call.1} parent=1 // pred_region
      %35 = dma.done [#allocation6], 128
    $region17: #{tpu_custom_call.1} parent=1 // pred_fallthru
      _
    %v36 = vld [vmem:[#allocation2] sm:$0xff]
    %v37 = vld [vmem:[#allocation5] sm:$0xff]
    %vm38 = vcmask 64512
    %v40 = vsel %vm38, %v36, 0
    %42 = vmatprep.subr.mxu0 0.0
    %43 = vmatpush1.msra.mxu0 %v37
    %44 = vmatprep.subr.mxu0 0.0
    %45 = vmatpush1.msra.mxu0 0.0
    %46 = vmatprep.subr.mxu0 0.0
    %47 = vmatpush1.msra.mxu0 0.0
    %48 = vmatprep.subr.mxu0 0.0
    %49 = vmatpush1.msra.mxu0 0.0
    %50 = vmatprep.subr.mxu0 0.0
    %51 = vmatpush1.msra.mxu0 0.0
    %52 = vmatprep.subr.mxu0 0.0
    %53 = vmatpush1.msra.mxu0 0.0
    %54 = vmatprep.subr.mxu0 0.0
    %55 = vmatpush1.msra.mxu0 0.0
    %56 = vmatprep.subr.mxu0 0.0
    %57 = vmatpush1.msra.mxu0 0.0
    %58 = vmatprep.subr.mxu0 0.0
    %59 = vmatpush1.msra.mxu0 0.0
    %60 = vmatprep.subr.mxu0 0.0
    %61 = vmatpush1.msra.mxu0 0.0
    %62 = vmatprep.subr.mxu0 0.0
    %63 = vmatpush1.msra.mxu0 0.0
    %64 = vmatprep.subr.mxu0 0.0
    %65 = vmatpush1.msra.mxu0 0.0
    %66 = vmatprep.subr.mxu0 0.0
    %67 = vmatpush1.msra.mxu0 0.0
    %68 = vmatprep.subr.mxu0 0.0
    %69 = vmatpush1.msra.mxu0 0.0
    %70 = vmatprep.subr.mxu0 0.0
    %71 = vmatpush1.msra.mxu0 0.0
    %72 = vmatprep.subr.mxu0 0.0
    %73 = vmatpush1.msra.mxu0 0.0
    %74 = vmatprep.subr.mxu0 0.0
    %75 = vmatpush1.msra.mxu0 0.0
    %76 = vmatprep.subr.mxu0 0.0
    %77 = vmatpush1.msra.mxu0 0.0
    %78 = vmatprep.subr.mxu0 0.0
    %79 = vmatpush1.msra.mxu0 0.0
    %80 = vmatprep.subr.mxu0 0.0
    %81 = vmatpush1.msra.mxu0 0.0
    %82 = vmatprep.subr.mxu0 0.0
    %83 = vmatpush1.msra.mxu0 0.0
    %84 = vmatprep.subr.mxu0 0.0
    %85 = vmatpush1.msra.mxu0 0.0
    %86 = vmatprep.subr.mxu0 0.0
    %87 = vmatpush1.msra.mxu0 0.0
    %88 = vmatprep.subr.mxu0 0.0
    %89 = vmatpush1.msra.mxu0 0.0
    %90 = vmatprep.subr.mxu0 0.0
    %91 = vmatpush1.msra.mxu0 0.0
    %92 = vmatprep.subr.mxu0 0.0
    %93 = vmatpush1.msra.mxu0 0.0
    %94 = vmatprep.subr.mxu0 0.0
    %95 = vmatpush1.msra.mxu0 0.0
    %96 = vmatprep.subr.mxu0 0.0
    %97 = vmatpush1.msra.mxu0 0.0
    %98 = vmatprep.subr.mxu0 0.0
    %99 = vmatpush1.msra.mxu0 0.0
    %100 = vmatprep.subr.mxu0 0.0
    %101 = vmatpush1.msra.mxu0 0.0
    %102 = vmatprep.subr.mxu0 0.0
    %103 = vmatpush1.msra.mxu0 0.0
    %104 = vmatprep.subr.mxu0 0.0
    %105 = vmatpush1.msra.mxu0 0.0
    %106 = vmatprep.mubr.f32.mxu0 0.0
    %107 = vmatmul.mubr.f32.gmra.mrb[0].mxu0 %v40
    %v108 = vpop.f32.mrb[0].mxu0
    %v109 = vadd.f32 0.0, %v108
    %v110 = vpop.f32.mrb[0].mxu0
    %111 = vdwg.mxu0
    %vm112 = vcmask 130048
    %113 = vst.msk [vmem:[#allocation7] sm:$0xff] %vm112, %v109
    // Predicated region
    $region18: #{tpu_custom_call.1} parent=1 // pred_check
      _
    $region19: #{tpu_custom_call.1} parent=1 // pred_check_branch
      %115 = sbr.rel (0) target = $region21
    $region20: #{tpu_custom_call.1} parent=1 // pred_region
      %s117 = ssub.s32 128, 128
      %118 = vsyncadd [#allocation4], %s117
      %s120 = sshll.u32 [#allocation7], 4
      %s121 = int_to_ptr.vmem [resolvable:$true] %s120
      %123 = dma.vmem_to_hbm [thread:$0]  %s121, 128, %s2, [#allocation4]
    $region21: #{tpu_custom_call.1} parent=1 // pred_fallthru
      _
    // Predicated region
    $region22: #{tpu_custom_call.1} parent=1 // pred_check
      _
    $region23: #{tpu_custom_call.1} parent=1 // pred_check_branch
      %125 = sbr.rel (0) target = $region25
    $region24: #{tpu_custom_call.1} parent=1 // pred_region
      %126 = dma.done [#allocation4], 128
    $region25: #{tpu_custom_call.1} parent=1 // pred_fallthru
      _
    %127 = vsyncpa [#allocation3], 1
    %128 = vsyncpa [#allocation6], 1
    %129 = vsyncpa [#allocation4], 1

</llo_original>
